<compile_context>
chip_gen: v7x
topology: tpu7x:2x2x1
jax: 0.10.0
libtpu: 0.0.40
codegen_flags: <defaults>
</compile_context>

<pallas_src>
import functools

import jax
import jax.numpy as jnp
import numpy as np
from jax import lax
from jax.experimental import pallas as pl
from jax.experimental.pallas import tpu as pltpu


# ---------------------------------------------------------------------------
# Generation-aware scoped-VMEM request (v5e/v6e: ~96 MiB, v7x: ~48 MiB, fallback 32 MiB)
# ---------------------------------------------------------------------------
@functools.lru_cache(maxsize=1)
def _vmem_limit_bytes():
    default = 32 * 1024 * 1024
    try:
        cap = int(pltpu.get_tpu_info().vmem_capacity_bytes)
    except Exception:
        return default
    if cap <= 0:
        return default
    return max(default, min(cap * 3 // 4, 96 * 1024 * 1024))


def _round_up(x, m):
    return ((x + m - 1) // m) * m


def _pick_tiles(L, max_q_tile, max_msda_tile):
    """tq1 (kernels 1/3, memory-bound -> big), tq2 (kernel 2, VALU/VMEM-bound -> smaller,
    divides tq1), and the padded query length (multiple of tq1, hence of tq2)."""
    tq1 = min(_round_up(L, 16), max(16, (max_q_tile // 16) * 16))
    tq2_cap = max(16, (max_msda_tile // 16) * 16)
    tq2 = 16
    t = 16
    while t <= min(tq1, tq2_cap):
        if tq1 % t == 0:
            tq2 = t
        t += 16
    return tq1, tq2, _round_up(L, tq1)


# ---------------------------------------------------------------------------
# Kernel 1: fused value / sampling-offset / attention-weight projections
# ---------------------------------------------------------------------------
def _qv_proj_kernel(src_ref, pos_ref, wv_ref, bv_ref, wq_ref, bq_ref,
                    val_ref, soaw_ref):
    x = src_ref[0]
    q = (x + pos_ref[0]).astype(jnp.bfloat16)     # query = src + pos, computed once
    xb = x.astype(jnp.bfloat16)
    v = jnp.dot(xb, wv_ref[...], preferred_element_type=jnp.float32) + bv_ref[...]
    val_ref[0] = v.astype(val_ref.dtype)          # value kept bf16 end-to-end
    soaw_ref[0] = (jnp.dot(q, wq_ref[...], preferred_element_type=jnp.float32)
                   + bq_ref[...])


def fused_qv_projections(src, pos, wv, bv, wq, bq, tq):
    B, L, D = src.shape
    Dq = wq.shape[1]
    tileD = pl.BlockSpec((1, tq, D), lambda b, t: (b, t, 0))
    tileQ = pl.BlockSpec((1, tq, Dq), lambda b, t: (b, t, 0))
    return pl.pallas_call(
        _qv_proj_kernel,
        out_shape=(jax.ShapeDtypeStruct((B, L, D), jnp.bfloat16),
                   jax.ShapeDtypeStruct((B, L, Dq), jnp.float32)),
        grid=(B, L // tq),
        in_specs=[tileD, tileD,
                  pl.BlockSpec((D, D), lambda b, t: (0, 0)),
                  pl.BlockSpec((1, D), lambda b, t: (0, 0)),
                  pl.BlockSpec((D, Dq), lambda b, t: (0, 0)),
                  pl.BlockSpec((1, Dq), lambda b, t: (0, 0))],
        out_specs=(tileD, tileQ),
        compiler_params=pltpu.CompilerParams(
            dimension_semantics=("parallel", "parallel"),
            vmem_limit_bytes=_vmem_limit_bytes()),
    )(src, pos, wv, bv.reshape(1, D), wq, bq.reshape(1, Dq))


# ---------------------------------------------------------------------------
# Kernel 2: MS-deformable attention + output projection + residual + LayerNorm
# ---------------------------------------------------------------------------
def _msda_kernel(value_ref, soaw_ref, rp_ref, src_ref, wout_ref, bout_ref,
                 g_ref, be_ref, o_ref, acc_ref, *,
                 spatial_shapes, n_heads, n_points, d_head, hw_chunk, eps):
    # value_ref: [1, Lv, D] bf16 value projection (resident across q-tiles)
    # soaw_ref:  [1, TQ, 3*HLP] f32: [x offsets | y offsets | attn logits], each block
    #            ordered (head, level, point); offsets already in pixel units
    # rp_ref:    [1, TQ, 2*n_levels] f32: [x ref per level | y ref per level], pixel coords
    # src_ref:   [1, TQ, D] residual input
    # acc_ref:   [TQ, D] f32 scratch, head-major attention output before Wout
    # o_ref:     [1, TQ, D] = LayerNorm(src + MSDeformAttn @ Wout + bout)
    soaw = soaw_ref[0]
    rp = rp_ref[0]
    n_levels = len(spatial_shapes)
    P = n_points
    LP = n_levels * P
    HLP = n_heads * LP
    Lq = soaw.shape[0]

    for h in range(n_heads):
        # per-head softmax over the (level, point) logits (contiguous lane block, f32)
        logit_h = soaw[:, 2 * HLP + h * LP: 2 * HLP + (h + 1) * LP]
        m = jnp.max(logit_h, axis=-1, keepdims=True)
        e = jnp.exp(logit_h - m)
        p_attn = e * pl.reciprocal(jnp.sum(e, axis=-1, keepdims=True), approx=True)

        acc_h = jnp.zeros((Lq, d_head), jnp.float32)
        row0 = 0
        for l, (H_, W_) in enumerate(spatial_shapes):
            HW = H_ * W_
            c = h * LP + l * P
            # pixel-space sampling locations for all P points of this (head, level)
            px_pts = soaw[:, c:c + P] + rp[:, l:l + 1]
            py_pts = soaw[:, HLP + c: HLP + c + P] + rp[:, n_levels + l: n_levels + l + 1]
            a_pts = p_attn[:, l * P:(l + 1) * P]

            def chunk(c0, cols, acc, *, _row0=row0, _W=W_, _h=h,
                      _px=px_pts, _py=py_pts, _a=a_pts):
                # bilinear "tent" weights == grid_sample(zeros padding, align_corners=False);
                # the P points and attention weights fold into ONE [TQ, cols] sampling
                # matrix -> a single MXU matmul against this head's value slab.
                idx = (lax.broadcasted_iota(jnp.int32, (1, cols), 1) + c0
                       ).astype(jnp.float32)
                jy = jnp.floor((idx + 0.5) / float(_W))
                jx = idx - jy * float(_W)
                S = jnp.zeros((Lq, cols), jnp.float32)
                for pt in range(n_points):
                    wx = jnp.maximum(1.0 - jnp.abs(_px[:, pt:pt + 1] - jx), 0.0)
                    wy = jnp.maximum(1.0 - jnp.abs(_py[:, pt:pt + 1] - jy), 0.0)
                    S = S + (wx * _a[:, pt:pt + 1]) * wy
                v = value_ref[0, pl.ds(_row0 + c0, cols),
                              _h * d_head:(_h + 1) * d_head]            # bf16
                return acc + jnp.dot(S.astype(jnp.bfloat16), v,
                                     preferred_element_type=jnp.float32)

            # chunk the spatial axis so live intermediates stay bounded in VMEM/vregs
            n_full = HW // hw_chunk
            rem = HW % hw_chunk
            if n_full > 1:
                acc_h = lax.fori_loop(
                    0, n_full,
                    lambda i, a: chunk(pl.multiple_of(i * hw_chunk, hw_chunk),
                                       hw_chunk, a),
                    acc_h)
            elif n_full == 1:
                acc_h = chunk(0, hw_chunk, acc_h)
            if rem:
                acc_h = chunk(n_full * hw_chunk, rem, acc_h)
            row0 += HW
        acc_ref[:, h * d_head:(h + 1) * d_head] = acc_h

    # merged output projection: ONE K = D matmul (full MXU depth) instead of n_heads K=d_head
    attn = jnp.dot(acc_ref[...].astype(jnp.bfloat16), wout_ref[...],
                   preferred_element_type=jnp.float32)
    v = src_ref[0] + attn + bout_ref[...]         # residual (dropout1 = identity, eval)
    mu = jnp.mean(v, axis=-1, keepdims=True)
    d = v - mu
    var = jnp.mean(d * d, axis=-1, keepdims=True)
    o_ref[0] = (d * lax.rsqrt(var + eps)) * g_ref[...] + be_ref[...]


def msda_outproj_layernorm(value, soaw, rp_pix, src, wout, bout, gamma, beta,
                           spatial_shapes, n_heads, n_points, tq, hw_chunk, eps=1e-5):
    B, L, D = src.shape
    Lv = value.shape[1]
    Dq = soaw.shape[2]
    R = rp_pix.shape[2]
    d_head = D // n_heads
    kern = functools.partial(
        _msda_kernel, spatial_shapes=tuple(spatial_shapes), n_heads=n_heads,
        n_points=n_points, d_head=d_head, hw_chunk=hw_chunk, eps=eps)
    return pl.pallas_call(
        kern,
        out_shape=jax.ShapeDtypeStruct((B, L, D), jnp.float32),
        grid=(B, L // tq),
        in_specs=[pl.BlockSpec((1, Lv, D), lambda b, t: (b, 0, 0)),   # resident over q-tiles
                  pl.BlockSpec((1, tq, Dq), lambda b, t: (b, t, 0)),
                  pl.BlockSpec((1, tq, R), lambda b, t: (b, t, 0)),
                  pl.BlockSpec((1, tq, D), lambda b, t: (b, t, 0)),
                  pl.BlockSpec((D, D), lambda b, t: (0, 0)),
                  pl.BlockSpec((1, D), lambda b, t: (0, 0)),
                  pl.BlockSpec((1, D), lambda b, t: (0, 0)),
                  pl.BlockSpec((1, D), lambda b, t: (0, 0))],
        out_specs=pl.BlockSpec((1, tq, D), lambda b, t: (b, t, 0)),
        scratch_shapes=[pltpu.VMEM((tq, D), jnp.float32)],
        compiler_params=pltpu.CompilerParams(
            dimension_semantics=("parallel", "parallel"),
            vmem_limit_bytes=_vmem_limit_bytes()),
    )(value, soaw, rp_pix, src, wout, bout.reshape(1, D),
      gamma.reshape(1, D), beta.reshape(1, D))


# ---------------------------------------------------------------------------
# Kernel 3: FFN (linear1 + ReLU + linear2) + residual + LayerNorm
# ---------------------------------------------------------------------------
def _ffn_ln_kernel(x_ref, w1_ref, b1_ref, w2_ref, b2_ref, g_ref, be_ref, o_ref, *, eps):
    x = x_ref[0]
    h = jnp.dot(x.astype(jnp.bfloat16), w1_ref[...],
                preferred_element_type=jnp.float32) + b1_ref[...]
    h = jnp.maximum(h, 0.0)                           # hidden stays in VMEM
    y = jnp.dot(h.astype(jnp.bfloat16), w2_ref[...],
                preferred_element_type=jnp.float32) + b2_ref[...]
    v = x + y                                         # residual (dropout = identity)
    mu = jnp.mean(v, axis=-1, keepdims=True)
    d = v - mu
    var = jnp.mean(d * d, axis=-1, keepdims=True)
    o_ref[0] = (d * lax.rsqrt(var + eps)) * g_ref[...] + be_ref[...]


def ffn_layernorm(x, w1, b1, w2, b2, gamma, beta, tq, eps=1e-5):
    B, L, D = x.shape
    Dff = w1.shape[1]
    return pl.pallas_call(
        functools.partial(_ffn_ln_kernel, eps=eps),
        out_shape=jax.ShapeDtypeStruct((B, L, D), jnp.float32),
        grid=(B, L // tq),
        in_specs=[pl.BlockSpec((1, tq, D), lambda b, t: (b, t, 0)),
                  pl.BlockSpec((D, Dff), lambda b, t: (0, 0)),
                  pl.BlockSpec((1, Dff), lambda b, t: (0, 0)),
                  pl.BlockSpec((Dff, D), lambda b, t: (0, 0)),
                  pl.BlockSpec((1, D), lambda b, t: (0, 0)),
                  pl.BlockSpec((1, D), lambda b, t: (0, 0)),
                  pl.BlockSpec((1, D), lambda b, t: (0, 0))],
        out_specs=pl.BlockSpec((1, tq, D), lambda b, t: (b, t, 0)),
        compiler_params=pltpu.CompilerParams(
            dimension_semantics=("parallel", "parallel"),
            vmem_limit_bytes=_vmem_limit_bytes()),
    )(x, w1, b1.reshape(1, Dff), w2, b2.reshape(1, D),
      gamma.reshape(1, D), beta.reshape(1, D))


# ---------------------------------------------------------------------------
# Encoder (glue around the Pallas kernels)
# ---------------------------------------------------------------------------
def get_reference_points(spatial_shapes, valid_ratios):
    """Exact port of DeformableTransformerEncoder.get_reference_points (cheap metadata)."""
    ref_list = []
    for lvl, (H_, W_) in enumerate(spatial_shapes):
        ref_y, ref_x = jnp.meshgrid(
            jnp.linspace(0.5, H_ - 0.5, H_, dtype=jnp.float32),
            jnp.linspace(0.5, W_ - 0.5, W_, dtype=jnp.float32),
            indexing="ij")
        ref_y = ref_y.reshape(-1)[None] / (valid_ratios[:, None, lvl, 1] * H_)
        ref_x = ref_x.reshape(-1)[None] / (valid_ratios[:, None, lvl, 0] * W_)
        ref = jnp.stack((ref_x, ref_y), -1)
        ref_list.append(ref)
    reference_points = jnp.concatenate(ref_list, axis=1)
    reference_points = reference_points[:, :, None] * valid_ratios[:, None]
    return reference_points          # [B, sum(H*W), n_levels, 2]


def _prepare_layer_params(p):
    """Permute the offset-projection columns so kernel-1's output is laid out as
    [x offsets | y offsets | attention logits] (contiguous lane blocks, (h,l,p) order),
    and cast matmul operands to bf16 (accumulation stays f32 in the kernels)."""
    wq = jnp.concatenate([p["so_w"][:, 0::2], p["so_w"][:, 1::2], p["aw_w"]], axis=1)
    bq = jnp.concatenate([p["so_b"][0::2], p["so_b"][1::2], p["aw_b"]], axis=0)
    return dict(
        wv=p["value_w"].astype(jnp.bfloat16), bv=p["value_b"],
        wq=wq.astype(jnp.bfloat16), bq=bq,
        wout=p["out_w"].astype(jnp.bfloat16), bout=p["out_b"],
        ln1_g=p["ln1_g"], ln1_b=p["ln1_b"],
        w1=p["l1_w"].astype(jnp.bfloat16), b1=p["l1_b"],
        w2=p["l2_w"].astype(jnp.bfloat16), b2=p["l2_b"],
        ln2_g=p["ln2_g"], ln2_b=p["ln2_b"],
    )


def encoder_layer_apply(pp, src, pos, rp_pix, spatial_shapes, n_heads, n_points,
                        tq1, tq2, hw_chunk):
    # --- MSDeformAttn (value/offset/weight proj fused; out-proj + LN fused) ---
    # TODO(synk): padding_mask masking of `value` not implemented (padding_mask=None here).
    value, soaw = fused_qv_projections(src, pos, pp["wv"], pp["bv"],
                                       pp["wq"], pp["bq"], tq1)
    src = msda_outproj_layernorm(value, soaw, rp_pix, src, pp["wout"], pp["bout"],
                                 pp["ln1_g"], pp["ln1_b"],
                                 spatial_shapes, n_heads, n_points, tq2, hw_chunk)
    # --- FFN + LN ---
    src = ffn_layernorm(src, pp["w1"], pp["b1"], pp["w2"], pp["b2"],
                        pp["ln2_g"], pp["ln2_b"], tq1)
    return src


def deformable_transformer_encoder(layer_params, src, spatial_shapes, valid_ratios,
                                   pos, n_heads, n_points,
                                   max_query_tile=512, max_msda_query_tile=128,
                                   hw_chunk=512):
    B, L, D = src.shape
    n_levels = len(spatial_shapes)
    assert hw_chunk % 8 == 0
    tq1, tq2, L_pad = _pick_tiles(L, max_query_tile, max_msda_query_tile)

    rp = get_reference_points(spatial_shapes, valid_ratios)      # [B, L, n_levels, 2]
    # pre-scale reference points to pixel coordinates once (offsets are already pixels):
    # px = ref_x * W - 0.5, py = ref_y * H - 0.5;   layout [x per level | y per level]
    scale = jnp.array([[w, h] for (h, w) in spatial_shapes], jnp.float32)
    rp_pix4 = rp * scale[None, None] - 0.5
    rp_pix = jnp.concatenate([rp_pix4[..., 0], rp_pix4[..., 1]], axis=-1)  # [B, L, 2*n_levels]

    # pad the token axis once so both query tiles divide it; pad rows sit past the last
    # level so sampling never reads them, and they are sliced off at the end.
    if L_pad != L:
        padw = ((0, 0), (0, L_pad - L), (0, 0))
        src = jnp.pad(src, padw)
        pos = jnp.pad(pos, padw)
        rp_pix = jnp.pad(rp_pix, padw)

    out = src
    for p in layer_params:
        pp = _prepare_layer_params(p)
        out = encoder_layer_apply(pp, out, pos, rp_pix, spatial_shapes,
                                  n_heads, n_points, tq1, tq2, hw_chunk)
    return out[:, :L]


# ---------------------------------------------------------------------------
# Pure-JAX reference (gather-based, f32) for validation
# ---------------------------------------------------------------------------
def _ref_layer_norm(x, g, b, eps=1e-5):
    mu = x.mean(-1, keepdims=True)
    var = ((x - mu) ** 2).mean(-1, keepdims=True)
    return (x - mu) / jnp.sqrt(var + eps) * g + b


def _ref_ms_deform_core(value, spatial_shapes, loc, aw):
    B, Lv, H, dh = value.shape
    Lq, P = loc.shape[1], loc.shape[4]
    out = jnp.zeros((B, Lq, H, dh), jnp.float32)
    bidx = jnp.arange(B)[:, None, None, None]
    hidx = jnp.arange(H)[None, None, :, None]
    s = 0
    for l, (H_, W_) in enumerate(spatial_shapes):
        HW = H_ * W_
        v_l = value[:, s:s + HW].reshape(B, H_, W_, H, dh)
        s += HW
        px = loc[:, :, :, l, :, 0] * W_ - 0.5
        py = loc[:, :, :, l, :, 1] * H_ - 0.5
        x0 = jnp.floor(px)
        y0 = jnp.floor(py)
        fx = px - x0
        fy = py - y0
        samp = jnp.zeros((B, Lq, H, P, dh), jnp.float32)
        for dy in (0, 1):
            for dx in (0, 1):
                cx = x0.astype(jnp.int32) + dx
                cy = y0.astype(jnp.int32) + dy
                w = (fx if dx else 1.0 - fx) * (fy if dy else 1.0 - fy)
                valid = ((cx >= 0) & (cx < W_) & (cy >= 0) & (cy < H_)).astype(jnp.float32)
                cxc = jnp.clip(cx, 0, W_ - 1)
                cyc = jnp.clip(cy, 0, H_ - 1)
                g = v_l[bidx, cyc, cxc, hidx]          # [B, Lq, H, P, dh]
                samp = samp + g * (w * valid)[..., None]
        out = out + jnp.sum(samp * aw[:, :, :, l, :, None], axis=3)
    return out.reshape(B, Lq, H * dh)


def ref_encoder(layer_params, src, pos, spatial_shapes, valid_ratios,
                n_heads, n_points):
    B, L, D = src.shape
    n_levels = len(spatial_shapes)
    dh = D // n_heads
    rp = get_reference_points(spatial_shapes, valid_ratios)
    norm = jnp.array([[w, h] for (h, w) in spatial_shapes], jnp.float32)
    out = src
    for p in layer_params:
        q = out + pos
        value = (out @ p["value_w"] + p["value_b"]).reshape(B, L, n_heads, dh)
        so = (q @ p["so_w"] + p["so_b"]).reshape(B, L, n_heads, n_levels, n_points, 2)
        awl = (q @ p["aw_w"] + p["aw_b"]).reshape(B, L, n_heads, n_levels * n_points)
        aw = jax.nn.softmax(awl, -1).reshape(B, L, n_heads, n_levels, n_points)
        loc = rp[:, :, None, :, None, :] + so / norm[None, None, None, :, None, :]
        attn = _ref_ms_deform_core(value, spatial_shapes, loc, aw)
        attn = attn @ p["out_w"] + p["out_b"]
        x = _ref_layer_norm(out + attn, p["ln1_g"], p["ln1_b"])
        h = jnp.maximum(x @ p["l1_w"] + p["l1_b"], 0.0) @ p["l2_w"] + p["l2_b"]
        out = _ref_layer_norm(x + h, p["ln2_g"], p["ln2_b"])
    return out


# ---------------------------------------------------------------------------
# Deterministic parameter init (synthetic; no checkpoint load)
# ---------------------------------------------------------------------------
def init_layer_params(key, d_model, d_ffn, n_heads, n_levels, n_points):
    ks = jax.random.split(key, 12)

    def w(k, shape):
        return 0.1 * jax.random.normal(k, shape, jnp.float32)

    nhlp = n_heads * n_levels * n_points
    return dict(
        value_w=w(ks[0], (d_model, d_model)), value_b=w(ks[1], (d_model,)),
        so_w=w(ks[2], (d_model, nhlp * 2)), so_b=w(ks[3], (nhlp * 2,)),
        aw_w=w(ks[4], (d_model, nhlp)), aw_b=w(ks[5], (nhlp,)),
        out_w=w(ks[6], (d_model, d_model)), out_b=w(ks[7], (d_model,)),
        l1_w=w(ks[8], (d_model, d_ffn)), l1_b=w(ks[9], (d_ffn,)),
        l2_w=w(ks[10], (d_ffn, d_model)), l2_b=w(ks[11], (d_model,)),
        ln1_g=jnp.ones((d_model,), jnp.float32), ln1_b=jnp.zeros((d_model,), jnp.float32),
        ln2_g=jnp.ones((d_model,), jnp.float32), ln2_b=jnp.zeros((d_model,), jnp.float32),
    )


if __name__ == "__main__":
    B = 2
    d_model = 32
    n_heads = 4
    n_levels = 2
    n_points = 2
    d_ffn = 64
    num_layers = 2
    spatial_shapes = ((8, 8), (4, 4))           # static multi-scale map shapes
    Lv = sum(h * w for h, w in spatial_shapes)  # 80 tokens

    key = jax.random.PRNGKey(0)
    k_src, k_pos, k_vr, k_par = jax.random.split(key, 4)
    src = jax.random.normal(k_src, (B, Lv, d_model), jnp.float32)
    pos = jax.random.normal(k_pos, (B, Lv, d_model), jnp.float32)
    valid_ratios = 0.8 + 0.2 * jax.random.uniform(k_vr, (B, n_levels, 2), jnp.float32)

    # _get_clones deep-copies one layer -> all layers start with identical params.
    params = init_layer_params(k_par, d_model, d_ffn, n_heads, n_levels, n_points)
    layer_params = [params] * num_layers

    # Small caps so the toy exercises: query padding (L=80 -> 96), decoupled tiles
    # (kernels 1/3 at TQ=48, kernel 2 at TQ=16), and both the fori_loop chunk path
    # (level 0: HW=64, chunk=32 -> 2 chunks) and the static remainder path (level 1: HW=16).
    out = deformable_transformer_encoder(layer_params, src, spatial_shapes,
                                         valid_ratios, pos, n_heads, n_points,
                                         max_query_tile=48, max_msda_query_tile=16,
                                         hw_chunk=32)
    out = jax.block_until_ready(out)

    ref = jax.block_until_ready(
        ref_encoder(layer_params, src, pos, spatial_shapes, valid_ratios,
                    n_heads, n_points))
    np.testing.assert_allclose(np.asarray(out), np.asarray(ref), rtol=5e-2, atol=5e-2)

    print("KERNEL_OK")
</pallas_src>

<mosaic_0001>
module attributes {stable_mosaic.version = 11 : i64} {
  func.func @_qv_proj_kernel(%arg0: i32, %arg1: i32, %arg2: memref<1x48x32xf32, #tpu.memory_space<vmem>>, %arg3: memref<1x48x32xf32, #tpu.memory_space<vmem>>, %arg4: memref<32x32xbf16, #tpu.memory_space<vmem>>, %arg5: memref<1x32xf32, #tpu.memory_space<vmem>>, %arg6: memref<32x48xbf16, #tpu.memory_space<vmem>>, %arg7: memref<1x48xf32, #tpu.memory_space<vmem>>, %arg8: memref<1x48x32xbf16, #tpu.memory_space<vmem>>, %arg9: memref<1x48x48xf32, #tpu.memory_space<vmem>>) attributes {dimension_semantics = [#tpu.dimension_semantics<parallel>, #tpu.dimension_semantics<parallel>], iteration_bounds = array<i64: 2, 2>, scalar_prefetch = 0 : i64, scratch_operands = 0 : i64, tpu.core_type = #tpu.core_type<tc>, window_params = [{transform_indices = @transform_0, window_bounds = array<i64: 1, 48, 32>}, {transform_indices = @transform_1, window_bounds = array<i64: 1, 48, 32>}, {pipeline_mode = #tpu.pipeline_mode<synchronous>, transform_indices = @transform_2, window_bounds = array<i64: 32, 32>}, {pipeline_mode = #tpu.pipeline_mode<synchronous>, transform_indices = @transform_3, window_bounds = array<i64: 1, 32>}, {pipeline_mode = #tpu.pipeline_mode<synchronous>, transform_indices = @transform_4, window_bounds = array<i64: 32, 48>}, {pipeline_mode = #tpu.pipeline_mode<synchronous>, transform_indices = @transform_5, window_bounds = array<i64: 1, 48>}, {transform_indices = @transform_6, window_bounds = array<i64: 1, 48, 32>}, {transform_indices = @transform_7, window_bounds = array<i64: 1, 48, 48>}]} {
    %c0 = arith.constant 0 : index
    %c0_0 = arith.constant 0 : index
    %c0_1 = arith.constant 0 : index
    %0 = vector.load %arg2[%c0, %c0_0, %c0_1] : memref<1x48x32xf32, #tpu.memory_space<vmem>>, vector<1x48x32xf32>
    %1 = vector.shape_cast %0 : vector<1x48x32xf32> to vector<48x32xf32>
    %c0_2 = arith.constant 0 : index
    %c0_3 = arith.constant 0 : index
    %c0_4 = arith.constant 0 : index
    %2 = vector.load %arg3[%c0_2, %c0_3, %c0_4] : memref<1x48x32xf32, #tpu.memory_space<vmem>>, vector<1x48x32xf32>
    %3 = vector.shape_cast %2 : vector<1x48x32xf32> to vector<48x32xf32>
    %4 = arith.addf %1, %3 : vector<48x32xf32>
    %5 = arith.truncf %4 : vector<48x32xf32> to vector<48x32xbf16>
    %6 = arith.truncf %1 : vector<48x32xf32> to vector<48x32xbf16>
    %c0_5 = arith.constant 0 : index
    %c0_6 = arith.constant 0 : index
    %7 = vector.load %arg4[%c0_5, %c0_6] : memref<32x32xbf16, #tpu.memory_space<vmem>>, vector<32x32xbf16>
    %cst = arith.constant dense<0.000000e+00> : vector<48x32xf32>
    %8 = tpu.matmul %6, %7, %cst {dimension_numbers = #tpu.dot_dimension_numbers<[1], [0], [0], [1], [0, 0, 1, 1], [], []>} : vector<48x32xbf16>, vector<32x32xbf16>, vector<48x32xf32> -> vector<48x32xf32>
    %c0_7 = arith.constant 0 : index
    %c0_8 = arith.constant 0 : index
    %9 = vector.load %arg5[%c0_7, %c0_8] : memref<1x32xf32, #tpu.memory_space<vmem>>, vector<1x32xf32>
    %10 = vector.broadcast %9 : vector<1x32xf32> to vector<48x32xf32>
    %11 = arith.addf %8, %10 : vector<48x32xf32>
    %12 = arith.truncf %11 : vector<48x32xf32> to vector<48x32xbf16>
    %c0_9 = arith.constant 0 : index
    %c0_10 = arith.constant 0 : index
    %c0_11 = arith.constant 0 : index
    %13 = vector.load %arg8[%c0_9, %c0_10, %c0_11] : memref<1x48x32xbf16, #tpu.memory_space<vmem>>, vector<1x48x32xbf16>
    %14 = vector.shape_cast %13 : vector<1x48x32xbf16> to vector<48x32xbf16>
    %15 = vector.shape_cast %12 : vector<48x32xbf16> to vector<1x48x32xbf16>
    tpu.vector_store %arg8[%c0_9, %c0_10, %c0_11], %15 {strides = array<i32>} : memref<1x48x32xbf16, #tpu.memory_space<vmem>>, vector<1x48x32xbf16>,
    %c0_12 = arith.constant 0 : index
    %c0_13 = arith.constant 0 : index
    %16 = vector.load %arg6[%c0_12, %c0_13] : memref<32x48xbf16, #tpu.memory_space<vmem>>, vector<32x48xbf16>
    %cst_14 = arith.constant dense<0.000000e+00> : vector<48x48xf32>
    %17 = tpu.matmul %5, %16, %cst_14 {dimension_numbers = #tpu.dot_dimension_numbers<[1], [0], [0], [1], [0, 0, 1, 1], [], []>} : vector<48x32xbf16>, vector<32x48xbf16>, vector<48x48xf32> -> vector<48x48xf32>
    %c0_15 = arith.constant 0 : index
    %c0_16 = arith.constant 0 : index
    %18 = vector.load %arg7[%c0_15, %c0_16] : memref<1x48xf32, #tpu.memory_space<vmem>>, vector<1x48xf32>
    %19 = vector.broadcast %18 : vector<1x48xf32> to vector<48x48xf32>
    %20 = arith.addf %17, %19 : vector<48x48xf32>
    %c0_17 = arith.constant 0 : index
    %c0_18 = arith.constant 0 : index
    %c0_19 = arith.constant 0 : index
    %21 = vector.load %arg9[%c0_17, %c0_18, %c0_19] : memref<1x48x48xf32, #tpu.memory_space<vmem>>, vector<1x48x48xf32>
    %22 = vector.shape_cast %21 : vector<1x48x48xf32> to vector<48x48xf32>
    %23 = vector.shape_cast %20 : vector<48x48xf32> to vector<1x48x48xf32>
    tpu.vector_store %arg9[%c0_17, %c0_18, %c0_19], %23 {strides = array<i32>} : memref<1x48x48xf32, #tpu.memory_space<vmem>>, vector<1x48x48xf32>,
    return
  }
  func.func @transform_0(%arg0: i32, %arg1: i32) -> (i32, i32, i32) {
    %c0_i32 = arith.constant 0 : i32
    %c0_i32_0 = arith.constant 0 : i32
    return %arg0, %arg1, %c0_i32 : i32, i32, i32
  }
  func.func @transform_1(%arg0: i32, %arg1: i32) -> (i32, i32, i32) {
    %c0_i32 = arith.constant 0 : i32
    %c0_i32_0 = arith.constant 0 : i32
    return %arg0, %arg1, %c0_i32 : i32, i32, i32
  }
  func.func @transform_2(%arg0: i32, %arg1: i32) -> (i32, i32) {
    %c0_i32 = arith.constant 0 : i32
    %c0_i32_0 = arith.constant 0 : i32
    %c0_i32_1 = arith.constant 0 : i32
    return %c0_i32, %c0_i32_0 : i32, i32
  }
  func.func @transform_3(%arg0: i32, %arg1: i32) -> (i32, i32) {
    %c0_i32 = arith.constant 0 : i32
    %c0_i32_0 = arith.constant 0 : i32
    %c0_i32_1 = arith.constant 0 : i32
    return %c0_i32, %c0_i32_0 : i32, i32
  }
  func.func @transform_4(%arg0: i32, %arg1: i32) -> (i32, i32) {
    %c0_i32 = arith.constant 0 : i32
    %c0_i32_0 = arith.constant 0 : i32
    %c0_i32_1 = arith.constant 0 : i32
    return %c0_i32, %c0_i32_0 : i32, i32
  }
  func.func @transform_5(%arg0: i32, %arg1: i32) -> (i32, i32) {
    %c0_i32 = arith.constant 0 : i32
    %c0_i32_0 = arith.constant 0 : i32
    %c0_i32_1 = arith.constant 0 : i32
    return %c0_i32, %c0_i32_0 : i32, i32
  }
  func.func @transform_6(%arg0: i32, %arg1: i32) -> (i32, i32, i32) {
    %c0_i32 = arith.constant 0 : i32
    %c0_i32_0 = arith.constant 0 : i32
    return %arg0, %arg1, %c0_i32 : i32, i32, i32
  }
  func.func @transform_7(%arg0: i32, %arg1: i32) -> (i32, i32, i32) {
    %c0_i32 = arith.constant 0 : i32
    %c0_i32_0 = arith.constant 0 : i32
    return %arg0, %arg1, %c0_i32 : i32, i32, i32
  }
}

</mosaic_0001>

<llo_original>
// kernel: tpu_custom_call.1
$region0: #{tpu_custom_call.1}
  #allocation0 [shape = 'u32[]', space=smem, size = 0x4, offset = 0x4, fixed_abs, tag = 'smem constant byte address 0x4 - core index']
  #allocation1 [shape = 'u32[144,128]{1,0:T(1,128)}', space=vmem, size = 0x12000, scoped, tag = 'internal scratch']
  %s0 = inlined_call_operand.vmem [shape: f32[2,96,32], index: 0, kind: input, shape index: {}]
  %s1 = inlined_call_operand.vmem [shape: f32[2,96,32], index: 1, kind: input, shape index: {}]
  %s2 = inlined_call_operand.vmem [shape: bf16[32,32], index: 2, kind: input, shape index: {}]
  %s3 = inlined_call_operand.vmem [shape: f32[1,32], index: 3, kind: input, shape index: {}]
  %s4 = inlined_call_operand.vmem [shape: bf16[32,48], index: 4, kind: input, shape index: {}]
  %s5 = inlined_call_operand.vmem [shape: f32[1,48], index: 5, kind: input, shape index: {}]
  %s6 = inlined_call_operand.vmem [shape: bf16[2,96,32], index: 6, kind: output, shape index: {0}]
  %s7 = inlined_call_operand.vmem [shape: f32[2,96,48], index: 7, kind: output, shape index: {1}]
  %8 = xla_tuple %s6, %s7
  %s9 = sld [smem:[#allocation0]]
  $region65: #{tpu_custom_call.1} parent=0
    _
  %s11 = ssub.s32 1, %s9
  %s12 = scalar_select 0, %s11, %s9
  loop: start=0, step=1, limit=6
  $region2: #{tpu_custom_call.1} parent=0 // loop_pre_header
    _
  $region3: #{tpu_custom_call.1} parent=0 // loop_header
    %s14 = sphi 0, %s18
    %p15 = scmp.ge.s32.totalorder %s14, 6
    %s21 = sphi 0, %s33
    %s22 = sphi 0, %s29
    %s23 = sphi 0, %s21
    %s24 = sphi 0, %s22
    %s25 = sphi 0, %s23
    %s26 = sphi 0, %s24
    %s38 = sphi 0, %s40
    %s41 = sphi 0, %s38
    %s42 = sphi 0, %s41
    %s58 = sphi 0, %s42
    %s66 = sphi 0, %s68
    %s69 = sphi 0, %s66
    %s70 = sphi 0, %s69
    %s86 = sphi 0, %s70
    %s90 = sphi 0, %s90
    %s92 = sphi 0, %s90
    %s93 = sphi 0, %s92
    %s107 = sphi 0, %s93
    %s111 = sphi 0, %s111
    %s113 = sphi 0, %s111
    %s114 = sphi 0, %s113
    %s128 = sphi 0, %s114
    %s132 = sphi 0, %s132
    %s134 = sphi 0, %s132
    %s135 = sphi 0, %s134
    %s149 = sphi 0, %s135
    %s153 = sphi 0, %s153
    %s155 = sphi 0, %s153
    %s156 = sphi 0, %s155
    %s170 = sphi 0, %s156
    %s178 = sphi 0, %s180
    %s181 = sphi 0, %s178
    %s182 = sphi 0, %s181
    %s198 = sphi 0, %s182
    %s206 = sphi 0, %s208
    %s209 = sphi 0, %s206
    %s210 = sphi 0, %s209
    %s226 = sphi 0, %s210
  $region4: #{tpu_custom_call.1} parent=0 // loop_header_branch
    %17 = sbr.rel (%p15) target = $region8
  $region5: #{tpu_custom_call.1} parent=0 // loop_body
    %s19 = ssub.s32 %s14, 1
    %s20 = ssub.s32 %s14, 2
    %s27 = sadd.s32 1, %s22
    %p28 = scmp.ge.s32.totalorder %s27, 2
    %s29 = scalar_select %p28, 0, %s27
    %s30 = sadd.s32 1, %s21
    %s31 = scalar_select %p28, %s30, %s21
    %p32 = scmp.ge.s32.totalorder %s31, 2
    %s33 = scalar_select %p32, 0, %s31
    %s34 = ssub.s32 %s21, %s33
    %s35 = ssub.s32 %s22, %s29
    %s36 = sor.u32 %s34, %s35
    %p37 = scmp.eq.s32.totalorder %s36, 0
    %s39 = sadd.s32 %s38, 1
    %s40 = scalar_select %p37, %s38, %s39
    %p43 = pneg %p37
    %p44 = scmp.eq.s32.totalorder %s14, 3
    %p45 = por %p43, %p44
    %p46 = scmp.ne.s32.totalorder %s38, %s41
    %p47 = scmp.eq.s32.totalorder %s14, 0
    %p48 = por %p46, %p47
    %p49 = scmp.ne.s32.totalorder %s38, %s41
    %p50 = scmp.eq.s32.totalorder %s19, 3
    %p51 = por %p49, %p50
    %p52 = scmp.ne.s32.totalorder %s41, %s42
    %p53 = scmp.eq.s32.totalorder %s19, 0
    %p54 = por %p52, %p53
    %p55 = scmp.ne.s32.totalorder %s41, %s42
    %p56 = scmp.eq.s32.totalorder %s20, 3
    %p57 = por %p55, %p56
    %p59 = scmp.ne.s32.totalorder %s42, %s58
    %p60 = scmp.eq.s32.totalorder %s20, 0
    %p61 = por %p59, %p60
    %s62 = ssub.s32 %s21, %s33
    %s63 = ssub.s32 %s22, %s29
    %s64 = sor.u32 %s62, %s63
    %p65 = scmp.eq.s32.totalorder %s64, 0
    %s67 = sadd.s32 %s66, 1
    %s68 = scalar_select %p65, %s66, %s67
    %p71 = pneg %p65
    %p72 = scmp.eq.s32.totalorder %s14, 3
    %p73 = por %p71, %p72
    %p74 = scmp.ne.s32.totalorder %s66, %s69
    %p75 = scmp.eq.s32.totalorder %s14, 0
    %p76 = por %p74, %p75
    %p77 = scmp.ne.s32.totalorder %s66, %s69
    %p78 = scmp.eq.s32.totalorder %s19, 3
    %p79 = por %p77, %p78
    %p80 = scmp.ne.s32.totalorder %s69, %s70
    %p81 = scmp.eq.s32.totalorder %s19, 0
    %p82 = por %p80, %p81
    %p83 = scmp.ne.s32.totalorder %s69, %s70
    %p84 = scmp.eq.s32.totalorder %s20, 3
    %p85 = por %p83, %p84
    %p87 = scmp.ne.s32.totalorder %s70, %s86
    %p88 = scmp.eq.s32.totalorder %s20, 0
    %p89 = por %p87, %p88
    %s91 = sadd.s32 %s90, 1
    %p94 = scmp.eq.s32.totalorder %s14, 3
    %p95 = scmp.ne.s32.totalorder %s90, %s92
    %p96 = scmp.eq.s32.totalorder %s14, 0
    %p97 = por %p95, %p96
    %p98 = scmp.ne.s32.totalorder %s90, %s92
    %p99 = scmp.eq.s32.totalorder %s19, 3
    %p100 = por %p98, %p99
    %p101 = scmp.ne.s32.totalorder %s92, %s93
    %p102 = scmp.eq.s32.totalorder %s19, 0
    %p103 = por %p101, %p102
    %p104 = scmp.ne.s32.totalorder %s92, %s93
    %p105 = scmp.eq.s32.totalorder %s20, 3
    %p106 = por %p104, %p105
    %p108 = scmp.ne.s32.totalorder %s93, %s107
    %p109 = scmp.eq.s32.totalorder %s20, 0
    %p110 = por %p108, %p109
    %s112 = sadd.s32 %s111, 1
    %p115 = scmp.eq.s32.totalorder %s14, 3
    %p116 = scmp.ne.s32.totalorder %s111, %s113
    %p117 = scmp.eq.s32.totalorder %s14, 0
    %p118 = por %p116, %p117
    %p119 = scmp.ne.s32.totalorder %s111, %s113
    %p120 = scmp.eq.s32.totalorder %s19, 3
    %p121 = por %p119, %p120
    %p122 = scmp.ne.s32.totalorder %s113, %s114
    %p123 = scmp.eq.s32.totalorder %s19, 0
    %p124 = por %p122, %p123
    %p125 = scmp.ne.s32.totalorder %s113, %s114
    %p126 = scmp.eq.s32.totalorder %s20, 3
    %p127 = por %p125, %p126
    %p129 = scmp.ne.s32.totalorder %s114, %s128
    %p130 = scmp.eq.s32.totalorder %s20, 0
    %p131 = por %p129, %p130
    %s133 = sadd.s32 %s132, 1
    %p136 = scmp.eq.s32.totalorder %s14, 3
    %p137 = scmp.ne.s32.totalorder %s132, %s134
    %p138 = scmp.eq.s32.totalorder %s14, 0
    %p139 = por %p137, %p138
    %p140 = scmp.ne.s32.totalorder %s132, %s134
    %p141 = scmp.eq.s32.totalorder %s19, 3
    %p142 = por %p140, %p141
    %p143 = scmp.ne.s32.totalorder %s134, %s135
    %p144 = scmp.eq.s32.totalorder %s19, 0
    %p145 = por %p143, %p144
    %p146 = scmp.ne.s32.totalorder %s134, %s135
    %p147 = scmp.eq.s32.totalorder %s20, 3
    %p148 = por %p146, %p147
    %p150 = scmp.ne.s32.totalorder %s135, %s149
    %p151 = scmp.eq.s32.totalorder %s20, 0
    %p152 = por %p150, %p151
    %s154 = sadd.s32 %s153, 1
    %p157 = scmp.eq.s32.totalorder %s14, 3
    %p158 = scmp.ne.s32.totalorder %s153, %s155
    %p159 = scmp.eq.s32.totalorder %s14, 0
    %p160 = por %p158, %p159
    %p161 = scmp.ne.s32.totalorder %s153, %s155
    %p162 = scmp.eq.s32.totalorder %s19, 3
    %p163 = por %p161, %p162
    %p164 = scmp.ne.s32.totalorder %s155, %s156
    %p165 = scmp.eq.s32.totalorder %s19, 0
    %p166 = por %p164, %p165
    %p167 = scmp.ne.s32.totalorder %s155, %s156
    %p168 = scmp.eq.s32.totalorder %s20, 3
    %p169 = por %p167, %p168
    %p171 = scmp.ne.s32.totalorder %s156, %s170
    %p172 = scmp.eq.s32.totalorder %s20, 0
    %p173 = por %p171, %p172
    %s174 = ssub.s32 %s21, %s33
    %s175 = ssub.s32 %s22, %s29
    %s176 = sor.u32 %s174, %s175
    %p177 = scmp.eq.s32.totalorder %s176, 0
    %s179 = sadd.s32 %s178, 1
    %s180 = scalar_select %p177, %s178, %s179
    %p183 = pneg %p177
    %p184 = scmp.eq.s32.totalorder %s14, 3
    %p185 = por %p183, %p184
    %p186 = scmp.ne.s32.totalorder %s178, %s181
    %p187 = scmp.eq.s32.totalorder %s14, 0
    %p188 = por %p186, %p187
    %p189 = scmp.ne.s32.totalorder %s178, %s181
    %p190 = scmp.eq.s32.totalorder %s19, 3
    %p191 = por %p189, %p190
    %p192 = scmp.ne.s32.totalorder %s181, %s182
    %p193 = scmp.eq.s32.totalorder %s19, 0
    %p194 = por %p192, %p193
    %p195 = scmp.ne.s32.totalorder %s181, %s182
    %p196 = scmp.eq.s32.totalorder %s20, 3
    %p197 = por %p195, %p196
    %p199 = scmp.ne.s32.totalorder %s182, %s198
    %p200 = scmp.eq.s32.totalorder %s20, 0
    %p201 = por %p199, %p200
    %s202 = ssub.s32 %s21, %s33
    %s203 = ssub.s32 %s22, %s29
    %s204 = sor.u32 %s202, %s203
    %p205 = scmp.eq.s32.totalorder %s204, 0
    %s207 = sadd.s32 %s206, 1
    %s208 = scalar_select %p205, %s206, %s207
    %p211 = pneg %p205
    %p212 = scmp.eq.s32.totalorder %s14, 3
    %p213 = por %p211, %p212
    %p214 = scmp.ne.s32.totalorder %s206, %s209
    %p215 = scmp.eq.s32.totalorder %s14, 0
    %p216 = por %p214, %p215
    %p217 = scmp.ne.s32.totalorder %s206, %s209
    %p218 = scmp.eq.s32.totalorder %s19, 3
    %p219 = por %p217, %p218
    %p220 = scmp.ne.s32.totalorder %s209, %s210
    %p221 = scmp.eq.s32.totalorder %s19, 0
    %p222 = por %p220, %p221
    %p223 = scmp.ne.s32.totalorder %s209, %s210
    %p224 = scmp.eq.s32.totalorder %s20, 3
    %p225 = por %p223, %p224
    %p227 = scmp.ne.s32.totalorder %s210, %s226
    %p228 = scmp.eq.s32.totalorder %s20, 0
    %p229 = por %p227, %p228
    %p230 = scmp.le.s32.totalorder 1, %s14
    %p231 = scmp.lt.s32.totalorder %s14, 5
    %p232 = pnand %p230, %p231
    %p233 = pneg %p232
    // Predicated region
    $region9: #{tpu_custom_call.1} parent=5 // pred_check
      _
    $region10: #{tpu_custom_call.1} parent=5 // pred_check_branch
      %235 = sbr.rel (%p232) target = $region12
    $region11: #{tpu_custom_call.1} parent=5 // pred_region
      %s236 = ssub.s32 %s14, 1
      // Predicated region
      $region13: #{tpu_custom_call.1} parent=11 // pred_check
        %p237 = pneg %p103
      $region14: #{tpu_custom_call.1} parent=11 // pred_check_branch
        %239 = sbr.rel (%p237) target = $region16
      $region15: #{tpu_custom_call.1} parent=11 // pred_region
        _
      $region16: #{tpu_custom_call.1} parent=11 // pred_fallthru
        _
      // Predicated region
      $region17: #{tpu_custom_call.1} parent=11 // pred_check
        %p240 = pneg %p124
      $region18: #{tpu_custom_call.1} parent=11 // pred_check_branch
        %242 = sbr.rel (%p240) target = $region20
      $region19: #{tpu_custom_call.1} parent=11 // pred_region
        _
      $region20: #{tpu_custom_call.1} parent=11 // pred_fallthru
        _
      // Predicated region
      $region21: #{tpu_custom_call.1} parent=11 // pred_check
        %p243 = pneg %p145
      $region22: #{tpu_custom_call.1} parent=11 // pred_check_branch
        %245 = sbr.rel (%p243) target = $region24
      $region23: #{tpu_custom_call.1} parent=11 // pred_region
        _
      $region24: #{tpu_custom_call.1} parent=11 // pred_fallthru
        _
      // Predicated region
      $region25: #{tpu_custom_call.1} parent=11 // pred_check
        %p246 = pneg %p166
      $region26: #{tpu_custom_call.1} parent=11 // pred_check_branch
        %248 = sbr.rel (%p246) target = $region28
      $region27: #{tpu_custom_call.1} parent=11 // pred_region
        _
      $region28: #{tpu_custom_call.1} parent=11 // pred_fallthru
        _
    $region12: #{tpu_custom_call.1} parent=5 // pred_fallthru
      _
    %p249 = scmp.lt.s32.totalorder %s14, 4
    // Predicated region
    $region29: #{tpu_custom_call.1} parent=5 // pred_check
      %p250 = pneg %p249
    $region30: #{tpu_custom_call.1} parent=5 // pred_check_branch
      %252 = sbr.rel (%p250) target = $region32
    $region31: #{tpu_custom_call.1} parent=5 // pred_region
      // Predicated region
      $region33: #{tpu_custom_call.1} parent=31 // pred_check
        %p253 = pneg %p48
      $region34: #{tpu_custom_call.1} parent=31 // pred_check_branch
        %255 = sbr.rel (%p253) target = $region36
      $region35: #{tpu_custom_call.1} parent=31 // pred_region
        %s256 = smul.u32 6, %s22
        %p257 = scmp.lt.s32.totalorder %s21, 1
        %s258 = scalar_select %p257, %s21, 1
        %p259 = scmp.lt.s32.totalorder %s256, 11
        %s260 = scalar_select %p259, %s256, 11
        %s261 = smul.addr %s258, 12
        %s262 = sadd.s32 %s260, %s261
        %s263 = smul.addr %s262, 8
        %s264 = scalar_lea.vmem %s0, %s263
        %s265 = smul.u32 6, %s22
      $region36: #{tpu_custom_call.1} parent=31 // pred_fallthru
        _
      // Predicated region
      $region37: #{tpu_custom_call.1} parent=31 // pred_check
        %p266 = pneg %p76
      $region38: #{tpu_custom_call.1} parent=31 // pred_check_branch
        %268 = sbr.rel (%p266) target = $region40
      $region39: #{tpu_custom_call.1} parent=31 // pred_region
        %s269 = smul.u32 6, %s22
        %p270 = scmp.lt.s32.totalorder %s21, 1
        %s271 = scalar_select %p270, %s21, 1
        %p272 = scmp.lt.s32.totalorder %s269, 11
        %s273 = scalar_select %p272, %s269, 11
        %s274 = smul.addr %s271, 12
        %s275 = sadd.s32 %s273, %s274
        %s276 = smul.addr %s275, 8
        %s277 = scalar_lea.vmem %s1, %s276
        %s278 = smul.u32 6, %s22
      $region40: #{tpu_custom_call.1} parent=31 // pred_fallthru
        _
    $region32: #{tpu_custom_call.1} parent=5 // pred_fallthru
      _
    %p279 = scmp.le.s32.totalorder 1, %s14
    %p280 = scmp.lt.s32.totalorder %s14, 5
    %p281 = pnand %p279, %p280
    %p282 = pneg %p281
    // Predicated region
    $region41: #{tpu_custom_call.1} parent=5 // pred_check
      _
    $region42: #{tpu_custom_call.1} parent=5 // pred_check_branch
      %284 = sbr.rel (%p281) target = $region44
    $region43: #{tpu_custom_call.1} parent=5 // pred_region
      %s285 = ssub.s32 %s14, 1
      %s286 = smul.u32 6, %s24
      %p287 = scmp.lt.s32.totalorder %s23, 1
      %s288 = scalar_select %p287, %s23, 1
      %p289 = scmp.lt.s32.totalorder %s286, 11
      %s290 = scalar_select %p289, %s286, 11
      %s291 = smul.addr %s288, 12
      %s292 = sadd.s32 %s290, %s291
      %s293 = smul.addr %s292, 8
      %s294 = scalar_lea.vmem %s0, %s293
      %p295 = pneg %p54
      %p296 = pneg %p51
      %s297 = smul.u32 6, %s24
      %p298 = scmp.lt.s32.totalorder %s23, 1
      %s299 = scalar_select %p298, %s23, 1
      %p300 = scmp.lt.s32.totalorder %s297, 11
      %s301 = scalar_select %p300, %s297, 11
      %s302 = smul.addr %s299, 12
      %s303 = sadd.s32 %s301, %s302
      %s304 = smul.addr %s303, 8
      %s305 = scalar_lea.vmem %s1, %s304
      %p306 = pneg %p82
      %p307 = pneg %p79
      %p308 = pneg %p103
      %p309 = pneg %p100
      %p310 = pneg %p124
      %p311 = pneg %p121
      %p312 = pneg %p145
      %p313 = pneg %p142
      %p314 = pneg %p166
      %p315 = pneg %p163
      %p316 = pneg %p194
      %p317 = pneg %p191
      %s318 = smul.u32 6, %s24
      %p319 = scmp.lt.s32.totalorder %s23, 1
      %s320 = scalar_select %p319, %s23, 1
      %p321 = scmp.lt.s32.totalorder %s318, 11
      %s322 = scalar_select %p321, %s318, 11
      %s323 = smul.addr %s320, 12
      %s324 = sadd.s32 %s322, %s323
      %s325 = smul.addr %s324, 4
      %s326 = scalar_lea.vmem %s6, %s325
      %p327 = pneg %p222
      %p328 = pneg %p219
      %s329 = smul.u32 6, %s24
      %p330 = scmp.lt.s32.totalorder %s23, 1
      %s331 = scalar_select %p330, %s23, 1
      %p332 = scmp.lt.s32.totalorder %s329, 11
      %s333 = scalar_select %p332, %s329, 11
      %s334 = smul.addr %s331, 12
      %s335 = sadd.s32 %s333, %s334
      %s336 = smul.addr %s335, 8
      %s337 = scalar_lea.vmem %s7, %s336
      %s338 = smul.u32 6, %s24
      %p339 = scmp.lt.s32.totalorder %s23, 1
      %s340 = scalar_select %p339, %s23, 1
      %p341 = scmp.lt.s32.totalorder %s338, 11
      %s342 = scalar_select %p341, %s338, 11
      %s343 = smul.addr %s340, 12
      %s344 = sadd.s32 %s342, %s343
      %s345 = smul.addr %s344, 8
      %s346 = scalar_lea.vmem %s0, %s345
      %s347 = smul.u32 6, %s24
      %s348 = smul.u32 6, %s24
      %p349 = scmp.lt.s32.totalorder %s23, 1
      %s350 = scalar_select %p349, %s23, 1
      %p351 = scmp.lt.s32.totalorder %s348, 11
      %s352 = scalar_select %p351, %s348, 11
      %s353 = smul.addr %s350, 12
      %s354 = sadd.s32 %s352, %s353
      %s355 = smul.addr %s354, 8
      %s356 = scalar_lea.vmem %s1, %s355
      %s357 = smul.u32 6, %s24
      %s358 = smul.u32 6, %s24
      %p359 = scmp.lt.s32.totalorder %s23, 1
      %s360 = scalar_select %p359, %s23, 1
      %p361 = scmp.lt.s32.totalorder %s358, 11
      %s362 = scalar_select %p361, %s358, 11
      %s363 = smul.addr %s360, 12
      %s364 = sadd.s32 %s362, %s363
      %s365 = smul.addr %s364, 4
      %s366 = scalar_lea.vmem %s6, %s365
      %s367 = smul.u32 6, %s24
      %s368 = smul.u32 6, %s24
      %p369 = scmp.lt.s32.totalorder %s23, 1
      %s370 = scalar_select %p369, %s23, 1
      %p371 = scmp.lt.s32.totalorder %s368, 11
      %s372 = scalar_select %p371, %s368, 11
      %s373 = smul.addr %s370, 12
      %s374 = sadd.s32 %s372, %s373
      %s375 = smul.addr %s374, 8
      %s376 = scalar_lea.vmem %s7, %s375
      %s377 = smul.u32 6, %s24
      %v379 = vld [vmem:[%s346] sm:$0xff]
      %v380 = vld [vmem:[%s346 + $0x8] sm:$0xff]
      %v381 = vld [vmem:[%s346 + $0x10] sm:$0xff]
      %v382 = vld [vmem:[%s346 + $0x18] sm:$0xff]
      %v383 = vld [vmem:[%s346 + $0x20] sm:$0xff]
      %v384 = vld [vmem:[%s346 + $0x28] sm:$0xff]
      %v385 = vld [vmem:[%s356] sm:$0xff]
      %v386 = vld [vmem:[%s356 + $0x8] sm:$0xff]
      %v387 = vld [vmem:[%s356 + $0x10] sm:$0xff]
      %v388 = vld [vmem:[%s356 + $0x18] sm:$0xff]
      %v389 = vld [vmem:[%s356 + $0x20] sm:$0xff]
      %v390 = vld [vmem:[%s356 + $0x28] sm:$0xff]
      %v391 = vadd.f32 %v379, %v385
      %v392 = vadd.f32 %v380, %v386
      %v393 = vadd.f32 %v381, %v387
      %v394 = vadd.f32 %v382, %v388
      %v395 = vadd.f32 %v383, %v389
      %v396 = vadd.f32 %v384, %v390
      %v397 = vpack.c.bf16 %v392, %v391
      %v398 = vpack.c.bf16 %v394, %v393
      %v399 = vpack.c.bf16 %v396, %v395
      %v400 = vpack.c.bf16 %v380, %v379
      %v401 = vpack.c.bf16 %v382, %v381
      %v402 = vpack.c.bf16 %v384, %v383
      %v403 = vld [vmem:[%s2] sm:$0xf]
      %v404 = vld [vmem:[%s2 + $0x4] sm:$0xf]
      %v405 = vld [vmem:[%s2 + $0x8] sm:$0xf]
      %v406 = vld [vmem:[%s2 + $0xc] sm:$0xf]
      %v407 = vld [vmem:[%s3] sm:$0x1]
      %v409 = vlaneseq
      %v410 = vshrl.u32 %v409, 7
      %v411 = vsub.s32 0, %v410
      %v412 = vrot.slane %v407, %v411
      %v418 = vunpack.c.l.b16 %v403
      %v419 = vunpack.c.l.b16 %v404
      %v420 = vunpack.c.l.b16 %v405
      %v421 = vunpack.c.l.b16 %v406
      %v422 = vpack.c.b16 %v419, %v418
      %v423 = vpack.c.b16 %v421, %v420
      %vm426 = vcmask 261120
      %v428 = vsel %vm426, %v400, 0
      %v431 = vsel %vm426, %v401, 0
      %v434 = vsel %vm426, %v402, 0
      %436 = vmatprep.subr.bf16.mxu0 0
      %437 = vmatpush1.bf16.msra.mxu0 %v422
      %438 = vmatprep.subr.bf16.mxu0 0
      %439 = vmatpush1.bf16.msra.mxu0 %v423
      %440 = vmatprep.subr.bf16.mxu0 0
      %441 = vmatpush1.bf16.msra.mxu0 0
      %442 = vmatprep.subr.bf16.mxu0 0
      %443 = vmatpush1.bf16.msra.mxu0 0
      %444 = vmatprep.subr.bf16.mxu0 0
      %445 = vmatpush1.bf16.msra.mxu0 0
      %446 = vmatprep.subr.bf16.mxu0 0
      %447 = vmatpush1.bf16.msra.mxu0 0
      %448 = vmatprep.subr.bf16.mxu0 0
      %449 = vmatpush1.bf16.msra.mxu0 0
      %450 = vmatprep.subr.bf16.mxu0 0
      %451 = vmatpush1.bf16.msra.mxu0 0
      %452 = vmatprep.subr.bf16.mxu0 0
      %453 = vmatpush1.bf16.msra.mxu0 0
      %454 = vmatprep.subr.bf16.mxu0 0
      %455 = vmatpush1.bf16.msra.mxu0 0
      %456 = vmatprep.subr.bf16.mxu0 0
      %457 = vmatpush1.bf16.msra.mxu0 0
      %458 = vmatprep.subr.bf16.mxu0 0
      %459 = vmatpush1.bf16.msra.mxu0 0
      %460 = vmatprep.subr.bf16.mxu0 0
      %461 = vmatpush1.bf16.msra.mxu0 0
      %462 = vmatprep.subr.bf16.mxu0 0
      %463 = vmatpush1.bf16.msra.mxu0 0
      %464 = vmatprep.subr.bf16.mxu0 0
      %465 = vmatpush1.bf16.msra.mxu0 0
      %466 = vmatprep.subr.bf16.mxu0 0
      %467 = vmatpush1.bf16.msra.mxu0 0
      %468 = vmatprep.mubr.bf16.mxu0 0
      %469 = vmatmul.mubr.bf16.gmra.mrb[0].mxu0 %v428
      %v470 = vpop.f32.mrb[0].mxu0
      %v471 = vadd.f32 %v412, %v470
      %v472 = vpop.f32.mrb[0].mxu0
      %v473 = vpop.f32.mrb[0].mxu0
      %v474 = vadd.f32 %v412, %v473
      %v475 = vpop.f32.mrb[0].mxu0
      %476 = vmatprep.mubr.bf16.mxu0 0
      %477 = vmatmul.mubr.bf16.gmra.mrb[0].mxu0 %v431
      %v478 = vpop.f32.mrb[0].mxu0
      %v479 = vadd.f32 %v412, %v478
      %v480 = vpop.f32.mrb[0].mxu0
      %v481 = vpop.f32.mrb[0].mxu0
      %v482 = vadd.f32 %v412, %v481
      %v483 = vpop.f32.mrb[0].mxu0
      %484 = vmatprep.mubr.bf16.mxu0 0
      %485 = vmatmul.mubr.bf16.gmra.mrb[0].mxu0 %v434
      %v486 = vpop.f32.mrb[0].mxu0
      %v487 = vadd.f32 %v412, %v486
      %v488 = vpop.f32.mrb[0].mxu0
      %v489 = vpop.f32.mrb[0].mxu0
      %v490 = vadd.f32 %v412, %v489
      %v491 = vpop.f32.mrb[0].mxu0
      %492 = vdwg.mxu0
      %v493 = vpack.c.bf16 %v474, %v471
      %v494 = vpack.c.bf16 %v482, %v479
      %v495 = vpack.c.bf16 %v490, %v487
      %v499 = vunpack.c.l.b16 %v493
      %v500 = vunpack.c.h.b16 %v493
      %v501 = vunpack.c.l.b16 %v494
      %v502 = vunpack.c.h.b16 %v494
      %v503 = vunpack.c.l.b16 %v495
      %v504 = vunpack.c.h.b16 %v495
      %v505 = vpack.c.b16 %v499, %v499
      %v506 = vpack.c.b16 %v500, %v500
      %v507 = vpack.c.b16 %v501, %v501
      %v508 = vpack.c.b16 %v502, %v502
      %v509 = vpack.c.b16 %v503, %v503
      %v510 = vpack.c.b16 %v504, %v504
      %vm517 = vcmask 257024
      %518 = vst.msk [vmem:[%s366] sm:$0xf] %vm517, %v505
      %519 = vst.msk [vmem:[%s366 + $0x4] sm:$0xf] %vm517, %v506
      %520 = vst.msk [vmem:[%s366 + $0x8] sm:$0xf] %vm517, %v507
      %521 = vst.msk [vmem:[%s366 + $0xc] sm:$0xf] %vm517, %v508
      %522 = vst.msk [vmem:[%s366 + $0x10] sm:$0xf] %vm517, %v509
      %523 = vst.msk [vmem:[%s366 + $0x14] sm:$0xf] %vm517, %v510
      %v524 = vld [vmem:[%s4] sm:$0xf]
      %v525 = vld [vmem:[%s4 + $0x4] sm:$0xf]
      %v526 = vld [vmem:[%s4 + $0x8] sm:$0xf]
      %v527 = vld [vmem:[%s4 + $0xc] sm:$0xf]
      %v528 = vld [vmem:[%s5] sm:$0x1]
      %v530 = vlaneseq
      %v531 = vshrl.u32 %v530, 7
      %v532 = vsub.s32 0, %v531
      %v533 = vrot.slane %v528, %v532
      %v539 = vunpack.c.l.b16 %v524
      %v540 = vunpack.c.l.b16 %v525
      %v541 = vunpack.c.l.b16 %v526
      %v542 = vunpack.c.l.b16 %v527
      %v543 = vpack.c.b16 %v540, %v539
      %v544 = vpack.c.b16 %v542, %v541
      %v548 = vsel %vm426, %v397, 0
      %v551 = vsel %vm426, %v398, 0
      %v554 = vsel %vm426, %v399, 0
      %556 = vmatprep.subr.bf16.mxu0 0
      %557 = vmatpush1.bf16.msra.mxu0 %v543
      %558 = vmatprep.subr.bf16.mxu0 0
      %559 = vmatpush1.bf16.msra.mxu0 %v544
      %560 = vmatprep.subr.bf16.mxu0 0
      %561 = vmatpush1.bf16.msra.mxu0 0
      %562 = vmatprep.subr.bf16.mxu0 0
      %563 = vmatpush1.bf16.msra.mxu0 0
      %564 = vmatprep.subr.bf16.mxu0 0
      %565 = vmatpush1.bf16.msra.mxu0 0
      %566 = vmatprep.subr.bf16.mxu0 0
      %567 = vmatpush1.bf16.msra.mxu0 0
      %568 = vmatprep.subr.bf16.mxu0 0
      %569 = vmatpush1.bf16.msra.mxu0 0
      %570 = vmatprep.subr.bf16.mxu0 0
      %571 = vmatpush1.bf16.msra.mxu0 0
      %572 = vmatprep.subr.bf16.mxu0 0
      %573 = vmatpush1.bf16.msra.mxu0 0
      %574 = vmatprep.subr.bf16.mxu0 0
      %575 = vmatpush1.bf16.msra.mxu0 0
      %576 = vmatprep.subr.bf16.mxu0 0
      %577 = vmatpush1.bf16.msra.mxu0 0
      %578 = vmatprep.subr.bf16.mxu0 0
      %579 = vmatpush1.bf16.msra.mxu0 0
      %580 = vmatprep.subr.bf16.mxu0 0
      %581 = vmatpush1.bf16.msra.mxu0 0
      %582 = vmatprep.subr.bf16.mxu0 0
      %583 = vmatpush1.bf16.msra.mxu0 0
      %584 = vmatprep.subr.bf16.mxu0 0
      %585 = vmatpush1.bf16.msra.mxu0 0
      %586 = vmatprep.subr.bf16.mxu0 0
      %587 = vmatpush1.bf16.msra.mxu0 0
      %588 = vmatprep.mubr.bf16.mxu0 0
      %589 = vmatmul.mubr.bf16.gmra.mrb[0].mxu0 %v548
      %v590 = vpop.f32.mrb[0].mxu0
      %v591 = vadd.f32 %v533, %v590
      %v592 = vpop.f32.mrb[0].mxu0
      %v593 = vpop.f32.mrb[0].mxu0
      %v594 = vadd.f32 %v533, %v593
      %v595 = vpop.f32.mrb[0].mxu0
      %596 = vmatprep.mubr.bf16.mxu0 0
      %597 = vmatmul.mubr.bf16.gmra.mrb[0].mxu0 %v551
      %v598 = vpop.f32.mrb[0].mxu0
      %v599 = vadd.f32 %v533, %v598
      %v600 = vpop.f32.mrb[0].mxu0
      %v601 = vpop.f32.mrb[0].mxu0
      %v602 = vadd.f32 %v533, %v601
      %v603 = vpop.f32.mrb[0].mxu0
      %604 = vmatprep.mubr.bf16.mxu0 0
      %605 = vmatmul.mubr.bf16.gmra.mrb[0].mxu0 %v554
      %v606 = vpop.f32.mrb[0].mxu0
      %v607 = vadd.f32 %v533, %v606
      %v608 = vpop.f32.mrb[0].mxu0
      %v609 = vpop.f32.mrb[0].mxu0
      %v610 = vadd.f32 %v533, %v609
      %v611 = vpop.f32.mrb[0].mxu0
      %612 = vdwg.mxu0
      %vm613 = vcmask 392192
      %614 = vst.msk [vmem:[%s376] sm:$0xff] %vm613, %v591
      %615 = vst.msk [vmem:[%s376 + $0x8] sm:$0xff] %vm613, %v594
      %616 = vst.msk [vmem:[%s376 + $0x10] sm:$0xff] %vm613, %v599
      %617 = vst.msk [vmem:[%s376 + $0x18] sm:$0xff] %vm613, %v602
      %618 = vst.msk [vmem:[%s376 + $0x20] sm:$0xff] %vm613, %v607
      %619 = vst.msk [vmem:[%s376 + $0x28] sm:$0xff] %vm613, %v610
      %s620 = smul.u32 6, %s24
      %p621 = scmp.lt.s32.totalorder %s23, 1
      %s622 = scalar_select %p621, %s23, 1
      %p623 = scmp.lt.s32.totalorder %s620, 11
      %s624 = scalar_select %p623, %s620, 11
      %s625 = smul.addr %s622, 12
      %s626 = sadd.s32 %s624, %s625
      %s627 = smul.addr %s626, 4
      %s628 = scalar_lea.vmem %s6, %s627
      %s629 = smul.u32 6, %s24
      %p630 = scmp.lt.s32.totalorder %s23, 1
      %s631 = scalar_select %p630, %s23, 1
      %p632 = scmp.lt.s32.totalorder %s629, 11
      %s633 = scalar_select %p632, %s629, 11
      %s634 = smul.addr %s631, 12
      %s635 = sadd.s32 %s633, %s634
      %s636 = smul.addr %s635, 8
      %s637 = scalar_lea.vmem %s7, %s636
      // Predicated region
      $region45: #{tpu_custom_call.1} parent=43 // pred_check
        %p638 = pneg %p191
      $region46: #{tpu_custom_call.1} parent=43 // pred_check_branch
        %640 = sbr.rel (%p638) target = $region48
      $region47: #{tpu_custom_call.1} parent=43 // pred_region
        %s641 = smul.u32 6, %s24
      $region48: #{tpu_custom_call.1} parent=43 // pred_fallthru
        _
      // Predicated region
      $region49: #{tpu_custom_call.1} parent=43 // pred_check
        %p642 = pneg %p219
      $region50: #{tpu_custom_call.1} parent=43 // pred_check_branch
        %644 = sbr.rel (%p642) target = $region52
      $region51: #{tpu_custom_call.1} parent=43 // pred_region
        %s645 = smul.u32 6, %s24
      $region52: #{tpu_custom_call.1} parent=43 // pred_fallthru
        _
    $region44: #{tpu_custom_call.1} parent=5 // pred_fallthru
      _
    %p646 = scmp.le.s32.totalorder 2, %s14
    // Predicated region
    $region53: #{tpu_custom_call.1} parent=5 // pred_check
      %p647 = pneg %p646
    $region54: #{tpu_custom_call.1} parent=5 // pred_check_branch
      %649 = sbr.rel (%p647) target = $region56
    $region55: #{tpu_custom_call.1} parent=5 // pred_region
      %s650 = ssub.s32 %s14, 2
      // Predicated region
      $region57: #{tpu_custom_call.1} parent=55 // pred_check
        %p651 = pneg %p197
      $region58: #{tpu_custom_call.1} parent=55 // pred_check_branch
        %653 = sbr.rel (%p651) target = $region60
      $region59: #{tpu_custom_call.1} parent=55 // pred_region
        %s654 = smul.u32 6, %s26
        %p655 = scmp.lt.s32.totalorder %s25, 1
        %s656 = scalar_select %p655, %s25, 1
        %p657 = scmp.lt.s32.totalorder %s654, 11
        %s658 = scalar_select %p657, %s654, 11
        %s659 = smul.addr %s656, 12
        %s660 = sadd.s32 %s658, %s659
        %s661 = smul.addr %s660, 4
        %s662 = scalar_lea.vmem %s6, %s661
      $region60: #{tpu_custom_call.1} parent=55 // pred_fallthru
        _
      // Predicated region
      $region61: #{tpu_custom_call.1} parent=55 // pred_check
        %p663 = pneg %p225
      $region62: #{tpu_custom_call.1} parent=55 // pred_check_branch
        %665 = sbr.rel (%p663) target = $region64
      $region63: #{tpu_custom_call.1} parent=55 // pred_region
        %s666 = smul.u32 6, %s26
        %p667 = scmp.lt.s32.totalorder %s25, 1
        %s668 = scalar_select %p667, %s25, 1
        %p669 = scmp.lt.s32.totalorder %s666, 11
        %s670 = scalar_select %p669, %s666, 11
        %s671 = smul.addr %s668, 12
        %s672 = sadd.s32 %s670, %s671
        %s673 = smul.addr %s672, 8
        %s674 = scalar_lea.vmem %s7, %s673
      $region64: #{tpu_custom_call.1} parent=55 // pred_fallthru
        _
    $region56: #{tpu_custom_call.1} parent=5 // pred_fallthru
      _
  $region6: #{tpu_custom_call.1} parent=0 // loop_footer
    %s18 = sadd.s32 1, %s14
  $region7: #{tpu_custom_call.1} parent=0 // loop_footer_branch
    %13 = sbr.rel target = $region3
  $region8: #{tpu_custom_call.1} parent=0 // loop_exit
    _

</llo_original>
